<compile_context>
chip_gen: v7x
topology: tpu7x:2x2x1
jax: 0.10.0
libtpu: 0.0.40
codegen_flags: <defaults>
</compile_context>

<pallas_src>
import re

import jax
import jax.numpy as jnp
from jax.experimental import pallas as pl
from jax.experimental.pallas import tpu as pltpu


# ---------------------------------------------------------------------------
# Hardware-aware configuration helpers (perf only; correctness is unaffected).
# ---------------------------------------------------------------------------
def _tpu_generation():
    try:
        kind = jax.devices()[0].device_kind
    except Exception:
        return 0
    m = re.search(r"(\d+)", kind)
    return int(m.group(1)) if m else 0


def _vmem_config(gen):
    """(tile-budget bytes, vmem_limit_bytes or None) per TPU generation."""
    if gen >= 7:
        # 64 MiB physical VMEM / 32 MiB default scoped -> stay well inside it.
        return 22 << 20, 32 << 20
    if gen in (5, 6):
        # 128 MiB physical; raise the scoped limit and use bigger batch tiles.
        return 48 << 20, 64 << 20
    # Unknown device: stay under the smallest default scoped limit.
    return 14 << 20, None


def _pick_tb(B, T, D, x_itemsize, out_itemsize, budget_bytes):
    """Largest batch tile that (a) divides B, (b) is a multiple of 8 when < B
    (sublane rule on the (TB, D) output block), (c) fits the VMEM budget for
    the double-buffered x/out blocks, and (d) leaves >=2 grid steps when
    possible so both v7x TensorCores get work."""
    per_row = 2 * T * D * x_itemsize + 2 * D * out_itemsize   # double-buffered x + out
    fixed = 4 * (D * 128 * 2 + 2 * 128 * 4) + (2 << 20)       # weights + chunk scratch slack
    cap = max(1, (budget_bytes - fixed) // max(per_row, 1))
    if B >= 16:
        cap = min(cap, B // 2)                                 # keep >=2 grid steps
    best = 0
    tb = 8
    while tb <= min(B, cap):
        if B % tb == 0:
            best = tb
        tb *= 2
    if best:
        return best
    for tb in range((min(B, cap) // 8) * 8, 0, -8):
        if B % tb == 0:
            return tb
    return B                                                   # single full-batch block


def _pick_chunk_rows(tb, t):
    """Chunk the tile's batch rows so the live (rows*T, 128) tanh/score
    intermediate stays ~<=256 M-rows (near the vreg file, no VMEM spill)."""
    target = max(1, 256 // max(t, 1))
    cb = min(tb, target)
    cb8 = (cb // 8) * 8
    while cb8 >= 8:
        if tb % cb8 == 0:
            return cb8
        cb8 -= 8
    while tb % cb:
        cb -= 1
    return max(cb, 1)


# ---------------------------------------------------------------------------
# Kernel
# ---------------------------------------------------------------------------
def _make_kernel(cb, act_dtype):
    def kernel(x_ref, w1_ref, b1_ref, w2_ref, o_ref):
        # x_ref : (TB, T, D)  w1_ref: (D, 128) bf16  b1_ref: (1, 128) f32
        # w2_ref: (1, 128) act_dtype               o_ref : (TB, D)
        TB, T, D = x_ref.shape
        H = w1_ref.shape[1]
        n_chunks = TB // cb

        w1 = w1_ref[...]                       # (D, H)   bf16 MXU operand
        b1 = b1_ref[...]                       # (1, H)   f32
        w2 = w2_ref[...]                       # (1, H)   act_dtype

        def body(c, carry):
            row0 = pl.multiple_of(c * cb, cb)
            x_chunk = x_ref[pl.ds(row0, cb), :, :]                  # (cb, T, D)

            # Projection on the MXU: bf16 operands, f32 accumulation.
            xm = x_chunk.reshape(cb * T, D).astype(jnp.bfloat16)
            pre = jnp.dot(xm, w1, preferred_element_type=jnp.float32) + b1  # (cb*T, H) f32

            # tanh (EUP) + N=1 scoring head as VPU multiply + XLU lane reduce.
            hh = jnp.tanh(pre.astype(act_dtype)).reshape(cb, T, H)  # bf16 on v6e/v7x
            s = jnp.sum((hh * w2).astype(jnp.float32), axis=-1)     # (cb, T) f32
            # (b2 omitted: a constant score bias cancels in the softmax.)

            # Numerically stable softmax over T, kept in f32.
            m = jnp.max(s, axis=-1, keepdims=True)                  # (cb, 1)
            p = jnp.exp(s - m)                                      # (cb, T)
            l = jnp.sum(p, axis=-1, keepdims=True)                  # (cb, 1)

            # Weighted temporal pooling (VPU/XLU); normalize at the end so the
            # EUP reciprocal only touches the (cb, 1) denominator column.
            pooled = jnp.sum(x_chunk.astype(jnp.float32) * p[:, :, None], axis=1)
            out = pooled * pl.reciprocal(l, approx=True)            # (cb, D)
            o_ref[pl.ds(row0, cb), :] = out.astype(o_ref.dtype)
            return carry

        jax.lax.fori_loop(0, n_chunks, body, 0, unroll=True)

    return kernel


# ---------------------------------------------------------------------------
# Wrapper
# ---------------------------------------------------------------------------
def temporal_attention(x, params, *, tb=None):
    """x: (B, T, feature_dim) -> (B, feature_dim)."""
    B, T, D = x.shape
    H = params["w1"].shape[0]                      # 128 (fixed by the module)

    gen = _tpu_generation()
    budget, vmem_limit = _vmem_config(gen)
    # bf16 EUP/VPU only exists on v6e/v7x; v5e keeps the activation math in f32.
    act_dtype = jnp.bfloat16 if gen >= 6 else jnp.float32

    TB = tb if tb is not None else _pick_tb(
        B, T, D, jnp.dtype(x.dtype).itemsize, jnp.dtype(x.dtype).itemsize, budget)
    assert B % TB == 0, (B, TB)
    CB = _pick_chunk_rows(TB, T)

    # Glue (one-time): PyTorch (out, in) weights -> (in, out); biases -> 2-D rows.
    w1t = jnp.asarray(params["w1"]).T.astype(jnp.bfloat16)        # (D, 128)
    b1 = jnp.asarray(params["b1"]).reshape(1, H).astype(jnp.float32)
    w2row = jnp.asarray(params["w2"]).reshape(1, H).astype(act_dtype)
    # params["b2"] intentionally unused (cancels in softmax).

    full = lambda b: (0, 0)
    compiler_kwargs = dict(dimension_semantics=("parallel",))
    if vmem_limit is not None:
        compiler_kwargs["vmem_limit_bytes"] = vmem_limit

    return pl.pallas_call(
        _make_kernel(CB, act_dtype),
        out_shape=jax.ShapeDtypeStruct((B, D), x.dtype),
        grid_spec=pltpu.PrefetchScalarGridSpec(
            num_scalar_prefetch=0,
            grid=(B // TB,),
            in_specs=[
                pl.BlockSpec((TB, T, D), lambda b: (b, 0, 0)),
                pl.BlockSpec((D, H), full),
                pl.BlockSpec((1, H), full),
                pl.BlockSpec((1, H), full),
            ],
            out_specs=pl.BlockSpec((TB, D), lambda b: (b, 0)),
        ),
        compiler_params=pltpu.CompilerParams(**compiler_kwargs),
    )(x, w1t, b1, w2row)


def _reference(x, params):
    h = jnp.tanh(x @ params["w1"].T + params["b1"])
    s = h @ params["w2"].T + params["b2"]              # (B, T, 1)
    attn = jax.nn.softmax(s, axis=1)                   # softmax over T
    return (x * attn).sum(axis=1)                      # (B, D)


if __name__ == "__main__":
    feature_dim, T, B = 32, 8, 16                      # small demo shapes
    H = 128                                            # fixed by the module

    key = jax.random.PRNGKey(0)
    k1, k2, k3, k4, k5 = jax.random.split(key, 5)

    # PyTorch Linear layout: weight (out, in), bias (out,)
    params = {
        "w1": jax.random.normal(k1, (H, feature_dim), jnp.float32) * 0.05,
        "b1": jax.random.normal(k2, (H,), jnp.float32) * 0.05,
        "w2": jax.random.normal(k3, (1, H), jnp.float32) * 0.05,
        "b2": jax.random.normal(k4, (1,), jnp.float32) * 0.05,
    }
    x = jax.random.normal(k5, (B, T, feature_dim), jnp.float32)

    out = temporal_attention(x, params)
    out = jax.block_until_ready(out)

    ref = _reference(x, params)
    assert out.shape == (B, feature_dim), out.shape
    err = float(jnp.max(jnp.abs(out - ref)))
    # bf16 MXU operands (+ bf16 tanh on v6e/v7x) and the approx reciprocal in
    # the softmax give ~1e-3-level differences vs the f32 reference.
    assert jnp.allclose(out, ref, atol=5e-3, rtol=5e-3), f"mismatch vs reference: {err}"

    print("KERNEL_OK")
</pallas_src>

<mosaic_0001>
module attributes {stable_mosaic.version = 11 : i64} {
  func.func @kernel(%arg0: i32, %arg1: memref<8x8x32xf32, #tpu.memory_space<vmem>>, %arg2: memref<32x128xbf16, #tpu.memory_space<vmem>>, %arg3: memref<1x128xf32, #tpu.memory_space<vmem>>, %arg4: memref<1x128xf32, #tpu.memory_space<vmem>>, %arg5: memref<8x32xf32, #tpu.memory_space<vmem>>) attributes {dimension_semantics = [#tpu.dimension_semantics<parallel>], iteration_bounds = array<i64: 2>, scalar_prefetch = 0 : i64, scratch_operands = 0 : i64, tpu.core_type = #tpu.core_type<tc>, window_params = [{transform_indices = @transform_0, window_bounds = array<i64: 8, 8, 32>}, {pipeline_mode = #tpu.pipeline_mode<synchronous>, transform_indices = @transform_1, window_bounds = array<i64: 32, 128>}, {pipeline_mode = #tpu.pipeline_mode<synchronous>, transform_indices = @transform_2, window_bounds = array<i64: 1, 128>}, {pipeline_mode = #tpu.pipeline_mode<synchronous>, transform_indices = @transform_3, window_bounds = array<i64: 1, 128>}, {transform_indices = @transform_4, window_bounds = array<i64: 8, 32>}]} {
    %c0 = arith.constant 0 : index
    %c0_0 = arith.constant 0 : index
    %0 = vector.load %arg2[%c0, %c0_0] : memref<32x128xbf16, #tpu.memory_space<vmem>>, vector<32x128xbf16>
    %c0_1 = arith.constant 0 : index
    %c0_2 = arith.constant 0 : index
    %1 = vector.load %arg3[%c0_1, %c0_2] : memref<1x128xf32, #tpu.memory_space<vmem>>, vector<1x128xf32>
    %c0_3 = arith.constant 0 : index
    %c0_4 = arith.constant 0 : index
    %2 = vector.load %arg4[%c0_3, %c0_4] : memref<1x128xf32, #tpu.memory_space<vmem>>, vector<1x128xf32>
    %c0_i32 = arith.constant 0 : i32
    %c8_i32 = arith.constant 8 : i32
    %3 = arith.muli %c0_i32, %c8_i32 : i32
    %4 = tpu.assume_multiple %3, 8 : i32
    %5 = arith.index_cast %4 : i32 to index
    %c0_5 = arith.constant 0 : index
    %c0_6 = arith.constant 0 : index
    %6 = vector.load %arg1[%5, %c0_5, %c0_6] : memref<8x8x32xf32, #tpu.memory_space<vmem>>, vector<8x8x32xf32>
    %7 = vector.shape_cast %6 : vector<8x8x32xf32> to vector<64x32xf32>
    %8 = arith.truncf %7 : vector<64x32xf32> to vector<64x32xbf16>
    %cst = arith.constant dense<0.000000e+00> : vector<64x128xf32>
    %9 = tpu.matmul %8, %0, %cst {dimension_numbers = #tpu.dot_dimension_numbers<[1], [0], [0], [1], [0, 0, 1, 1], [], []>} : vector<64x32xbf16>, vector<32x128xbf16>, vector<64x128xf32> -> vector<64x128xf32>
    %10 = vector.broadcast %1 : vector<1x128xf32> to vector<64x128xf32>
    %11 = arith.addf %9, %10 : vector<64x128xf32>
    %12 = math.tanh %11 : vector<64x128xf32>
    %13 = vector.shape_cast %12 : vector<64x128xf32> to vector<8x8x128xf32>
    %14 = vector.shape_cast %2 : vector<1x128xf32> to vector<1x1x128xf32>
    %15 = vector.broadcast %14 : vector<1x1x128xf32> to vector<8x8x128xf32>
    %16 = arith.mulf %13, %15 : vector<8x8x128xf32>
    %cst_7 = arith.constant dense<0.000000e+00> : vector<8x8xf32>
    %17 = vector.multi_reduction <add>, %16, %cst_7 [2] : vector<8x8x128xf32> to vector<8x8xf32>
    %cst_8 = arith.constant dense<0xFF800000> : vector<8xf32>
    %18 = vector.multi_reduction <maximumf>, %17, %cst_8 [1] : vector<8x8xf32> to vector<8xf32>
    %19 = vector.shape_cast %18 : vector<8xf32> to vector<8x1xf32>
    %20 = vector.broadcast %19 : vector<8x1xf32> to vector<8x8xf32>
    %21 = arith.subf %17, %20 : vector<8x8xf32>
    %22 = math.exp %21 : vector<8x8xf32>
    %cst_9 = arith.constant dense<0.000000e+00> : vector<8xf32>
    %23 = vector.multi_reduction <add>, %22, %cst_9 [1] : vector<8x8xf32> to vector<8xf32>
    %24 = vector.shape_cast %23 : vector<8xf32> to vector<8x1xf32>
    %25 = vector.shape_cast %22 : vector<8x8xf32> to vector<8x8x1xf32>
    %26 = vector.broadcast %25 : vector<8x8x1xf32> to vector<8x8x32xf32>
    %27 = arith.mulf %6, %26 : vector<8x8x32xf32>
    %cst_10 = arith.constant dense<0.000000e+00> : vector<8x32xf32>
    %28 = vector.multi_reduction <add>, %27, %cst_10 [1] : vector<8x8x32xf32> to vector<8x32xf32>
    %29 = tpu.reciprocal %24 {approx = true} : vector<8x1xf32> -> vector<8x1xf32>
    %30 = vector.broadcast %29 : vector<8x1xf32> to vector<8x32xf32>
    %31 = arith.mulf %28, %30 : vector<8x32xf32>
    %32 = arith.index_cast %4 : i32 to index
    %c0_11 = arith.constant 0 : index
    %33 = vector.load %arg5[%32, %c0_11] : memref<8x32xf32, #tpu.memory_space<vmem>>, vector<8x32xf32>
    tpu.vector_store %arg5[%32, %c0_11], %31 {strides = array<i32>} : memref<8x32xf32, #tpu.memory_space<vmem>>, vector<8x32xf32>,
    %c1_i32 = arith.constant 1 : i32
    return
  }
  func.func @transform_0(%arg0: i32) -> (i32, i32, i32) {
    %c0_i32 = arith.constant 0 : i32
    %c0_i32_0 = arith.constant 0 : i32
    %c0_i32_1 = arith.constant 0 : i32
    return %arg0, %c0_i32, %c0_i32_0 : i32, i32, i32
  }
  func.func @transform_1(%arg0: i32) -> (i32, i32) {
    %c0_i32 = arith.constant 0 : i32
    %c0_i32_0 = arith.constant 0 : i32
    %c0_i32_1 = arith.constant 0 : i32
    return %c0_i32, %c0_i32_0 : i32, i32
  }
  func.func @transform_2(%arg0: i32) -> (i32, i32) {
    %c0_i32 = arith.constant 0 : i32
    %c0_i32_0 = arith.constant 0 : i32
    %c0_i32_1 = arith.constant 0 : i32
    return %c0_i32, %c0_i32_0 : i32, i32
  }
  func.func @transform_3(%arg0: i32) -> (i32, i32) {
    %c0_i32 = arith.constant 0 : i32
    %c0_i32_0 = arith.constant 0 : i32
    %c0_i32_1 = arith.constant 0 : i32
    return %c0_i32, %c0_i32_0 : i32, i32
  }
  func.func @transform_4(%arg0: i32) -> (i32, i32) {
    %c0_i32 = arith.constant 0 : i32
    %c0_i32_0 = arith.constant 0 : i32
    return %arg0, %c0_i32 : i32, i32
  }
}

</mosaic_0001>

<llo_original>
// kernel: tpu_custom_call.1
$region0: #{tpu_custom_call.1}
  #allocation0 [shape = 'u32[]', space=smem, size = 0x4, offset = 0x4, fixed_abs, tag = 'smem constant byte address 0x4 - core index']
  #allocation1 [shape = 'u32[144,128]{1,0:T(1,128)}', space=vmem, size = 0x12000, scoped, tag = 'internal scratch']
  %s0 = inlined_call_operand.hbm [shape: f32[16,8,32], index: 0, kind: input, shape index: {}]
  %s1 = inlined_call_operand.hbm [shape: bf16[32,128], index: 1, kind: input, shape index: {}]
  %s2 = inlined_call_operand.vmem [shape: f32[1,128], index: 2, kind: input, shape index: {}]
  %s3 = inlined_call_operand.vmem [shape: f32[1,128], index: 3, kind: input, shape index: {}]
  %s4 = inlined_call_operand.hbm [shape: f32[16,32], index: 4, kind: output, shape index: {}]
  %s5 = sld [smem:[#allocation0]]
  $region57: #{tpu_custom_call.1} parent=0
    _
  %s7 = ssub.s32 1, %s5
  %s8 = scalar_select 0, %s7, %s5
  $region1: #{tpu_custom_call.1} parent=0
    #allocation2 [shape = 'u8[65536]{0}', space=vmem, size = 0x10000, scoped, tag = 'input window, operand 0']
    #allocation3 [shape = 's32[2]{0}', space=sflag, size = 0x8, scoped, tag = 'scoped memory for tpu_custom_call.1']
    #allocation4 [shape = 's32[2]{0}', space=sflag, size = 0x8, scoped, tag = 'scoped memory for tpu_custom_call.1']
    #allocation5 [shape = 'u8[8192]{0}', space=vmem, size = 0x2000, scoped, tag = 'input window, operand 1, single buffered']
    #allocation6 [shape = 's32[1]{0}', space=sflag, size = 0x4, scoped, tag = 'scoped memory for tpu_custom_call.1']
    #allocation7 [shape = 'u8[8192]{0}', space=vmem, size = 0x2000, scoped, tag = 'output window, operand 0']
    %9 = vsyncpa [#allocation3], 0
    %s10 = scalar_lea.sflag [#allocation3], 1
    %11 = vsyncpa %s10, 0
    %12 = vsyncpa [#allocation6], 0
    %13 = vsyncpa [#allocation4], 0
    %s14 = scalar_lea.sflag [#allocation4], 1
    %15 = vsyncpa %s14, 0
    loop: start=0, step=1, limit=4
    $region2: #{tpu_custom_call.1} parent=1 // loop_pre_header
      _
    $region3: #{tpu_custom_call.1} parent=1 // loop_header
      %s17 = sphi 0, %s21
      %p18 = scmp.ge.s32.totalorder %s17, 4
      %s27 = sphi 0, %s29
      %s30 = sphi 0, %s27
      %s31 = sphi 0, %s30
      %s47 = sphi 0, %s31
      %s51 = sphi 0, %s51
      %s53 = sphi 0, %s51
      %s54 = sphi 0, %s53
      %s68 = sphi 0, %s54
      %s72 = sphi 0, %s72
      %s74 = sphi 0, %s72
      %s75 = sphi 0, %s74
      %s89 = sphi 0, %s75
      %s93 = sphi 0, %s93
      %s95 = sphi 0, %s93
      %s96 = sphi 0, %s95
      %s110 = sphi 0, %s96
      %s116 = sphi 0, %s118
      %s119 = sphi 0, %s116
      %s120 = sphi 0, %s119
      %s136 = sphi 0, %s120
    $region4: #{tpu_custom_call.1} parent=1 // loop_header_branch
      %20 = sbr.rel (%p18) target = $region8
    $region5: #{tpu_custom_call.1} parent=1 // loop_body
      %s22 = ssub.s32 %s17, 1
      %s23 = ssub.s32 %s17, 2
      %s24 = sadd.s32 %s17, 1
      %s25 = ssub.s32 %s17, %s24
      %p26 = scmp.eq.s32.totalorder %s25, 0
      %s28 = sadd.s32 %s27, 1
      %s29 = scalar_select %p26, %s27, %s28
      %p32 = pneg %p26
      %p33 = scmp.eq.s32.totalorder %s17, 1
      %p34 = por %p32, %p33
      %p35 = scmp.ne.s32.totalorder %s27, %s30
      %p36 = scmp.eq.s32.totalorder %s17, 0
      %p37 = por %p35, %p36
      %p38 = scmp.ne.s32.totalorder %s27, %s30
      %p39 = scmp.eq.s32.totalorder %s22, 1
      %p40 = por %p38, %p39
      %p41 = scmp.ne.s32.totalorder %s30, %s31
      %p42 = scmp.eq.s32.totalorder %s22, 0
      %p43 = por %p41, %p42
      %p44 = scmp.ne.s32.totalorder %s30, %s31
      %p45 = scmp.eq.s32.totalorder %s23, 1
      %p46 = por %p44, %p45
      %p48 = scmp.ne.s32.totalorder %s31, %s47
      %p49 = scmp.eq.s32.totalorder %s23, 0
      %p50 = por %p48, %p49
      %s52 = sadd.s32 %s51, 1
      %p55 = scmp.eq.s32.totalorder %s17, 1
      %p56 = scmp.ne.s32.totalorder %s51, %s53
      %p57 = scmp.eq.s32.totalorder %s17, 0
      %p58 = por %p56, %p57
      %p59 = scmp.ne.s32.totalorder %s51, %s53
      %p60 = scmp.eq.s32.totalorder %s22, 1
      %p61 = por %p59, %p60
      %p62 = scmp.ne.s32.totalorder %s53, %s54
      %p63 = scmp.eq.s32.totalorder %s22, 0
      %p64 = por %p62, %p63
      %p65 = scmp.ne.s32.totalorder %s53, %s54
      %p66 = scmp.eq.s32.totalorder %s23, 1
      %p67 = por %p65, %p66
      %p69 = scmp.ne.s32.totalorder %s54, %s68
      %p70 = scmp.eq.s32.totalorder %s23, 0
      %p71 = por %p69, %p70
      %s73 = sadd.s32 %s72, 1
      %p76 = scmp.eq.s32.totalorder %s17, 1
      %p77 = scmp.ne.s32.totalorder %s72, %s74
      %p78 = scmp.eq.s32.totalorder %s17, 0
      %p79 = por %p77, %p78
      %p80 = scmp.ne.s32.totalorder %s72, %s74
      %p81 = scmp.eq.s32.totalorder %s22, 1
      %p82 = por %p80, %p81
      %p83 = scmp.ne.s32.totalorder %s74, %s75
      %p84 = scmp.eq.s32.totalorder %s22, 0
      %p85 = por %p83, %p84
      %p86 = scmp.ne.s32.totalorder %s74, %s75
      %p87 = scmp.eq.s32.totalorder %s23, 1
      %p88 = por %p86, %p87
      %p90 = scmp.ne.s32.totalorder %s75, %s89
      %p91 = scmp.eq.s32.totalorder %s23, 0
      %p92 = por %p90, %p91
      %s94 = sadd.s32 %s93, 1
      %p97 = scmp.eq.s32.totalorder %s17, 1
      %p98 = scmp.ne.s32.totalorder %s93, %s95
      %p99 = scmp.eq.s32.totalorder %s17, 0
      %p100 = por %p98, %p99
      %p101 = scmp.ne.s32.totalorder %s93, %s95
      %p102 = scmp.eq.s32.totalorder %s22, 1
      %p103 = por %p101, %p102
      %p104 = scmp.ne.s32.totalorder %s95, %s96
      %p105 = scmp.eq.s32.totalorder %s22, 0
      %p106 = por %p104, %p105
      %p107 = scmp.ne.s32.totalorder %s95, %s96
      %p108 = scmp.eq.s32.totalorder %s23, 1
      %p109 = por %p107, %p108
      %p111 = scmp.ne.s32.totalorder %s96, %s110
      %p112 = scmp.eq.s32.totalorder %s23, 0
      %p113 = por %p111, %p112
      %s114 = ssub.s32 %s17, %s24
      %p115 = scmp.eq.s32.totalorder %s114, 0
      %s117 = sadd.s32 %s116, 1
      %s118 = scalar_select %p115, %s116, %s117
      %p121 = pneg %p115
      %p122 = scmp.eq.s32.totalorder %s17, 1
      %p123 = por %p121, %p122
      %p124 = scmp.ne.s32.totalorder %s116, %s119
      %p125 = scmp.eq.s32.totalorder %s17, 0
      %p126 = por %p124, %p125
      %p127 = scmp.ne.s32.totalorder %s116, %s119
      %p128 = scmp.eq.s32.totalorder %s22, 1
      %p129 = por %p127, %p128
      %p130 = scmp.ne.s32.totalorder %s119, %s120
      %p131 = scmp.eq.s32.totalorder %s22, 0
      %p132 = por %p130, %p131
      %p133 = scmp.ne.s32.totalorder %s119, %s120
      %p134 = scmp.eq.s32.totalorder %s23, 1
      %p135 = por %p133, %p134
      %p137 = scmp.ne.s32.totalorder %s120, %s136
      %p138 = scmp.eq.s32.totalorder %s23, 0
      %p139 = por %p137, %p138
      %p140 = scmp.le.s32.totalorder 1, %s17
      %p141 = scmp.lt.s32.totalorder %s17, 3
      %p142 = pnand %p140, %p141
      %p143 = pneg %p142
      // Predicated region
      $region9: #{tpu_custom_call.1} parent=5 // pred_check
        _
      $region10: #{tpu_custom_call.1} parent=5 // pred_check_branch
        %145 = sbr.rel (%p142) target = $region12
      $region11: #{tpu_custom_call.1} parent=5 // pred_region
        %s146 = ssub.s32 %s17, 1
        // Predicated region
        $region13: #{tpu_custom_call.1} parent=11 // pred_check
          %p147 = pneg %p64
        $region14: #{tpu_custom_call.1} parent=11 // pred_check_branch
          %149 = sbr.rel (%p147) target = $region16
        $region15: #{tpu_custom_call.1} parent=11 // pred_region
          %s151 = ssub.s32 256, 256
          %152 = vsyncadd [#allocation6], %s151
          %s153 = sshll.u32 [#allocation5], 4
          %s154 = int_to_ptr.vmem [resolvable:$true] %s153
          %159 = dma.hbm_to_vmem [thread:$0]  %s1, 256, %s154, [#allocation6], 64, 64, 4
        $region16: #{tpu_custom_call.1} parent=11 // pred_fallthru
          _
        // Predicated region
        $region17: #{tpu_custom_call.1} parent=11 // pred_check
          %p160 = pneg %p85
        $region18: #{tpu_custom_call.1} parent=11 // pred_check_branch
          %162 = sbr.rel (%p160) target = $region20
        $region19: #{tpu_custom_call.1} parent=11 // pred_region
          _
        $region20: #{tpu_custom_call.1} parent=11 // pred_fallthru
          _
        // Predicated region
        $region21: #{tpu_custom_call.1} parent=11 // pred_check
          %p163 = pneg %p106
        $region22: #{tpu_custom_call.1} parent=11 // pred_check_branch
          %165 = sbr.rel (%p163) target = $region24
        $region23: #{tpu_custom_call.1} parent=11 // pred_region
          _
        $region24: #{tpu_custom_call.1} parent=11 // pred_fallthru
          _
      $region12: #{tpu_custom_call.1} parent=5 // pred_fallthru
        _
      %p166 = scmp.lt.s32.totalorder %s17, 2
      // Predicated region
      $region25: #{tpu_custom_call.1} parent=5 // pred_check
        %p167 = pneg %p166
      $region26: #{tpu_custom_call.1} parent=5 // pred_check_branch
        %169 = sbr.rel (%p167) target = $region28
      $region27: #{tpu_custom_call.1} parent=5 // pred_region
        // Predicated region
        $region29: #{tpu_custom_call.1} parent=27 // pred_check
          %p170 = pneg %p37
        $region30: #{tpu_custom_call.1} parent=27 // pred_check_branch
          %172 = sbr.rel (%p170) target = $region32
        $region31: #{tpu_custom_call.1} parent=27 // pred_region
          %s173 = sand.u32 %s27, 1
          %s174 = scalar_lea.sflag [#allocation3], %s173
          %s175 = sand.u32 %s27, 1
          %s176 = smul.addr %s175, 64
          %s177 = scalar_lea.vmem [#allocation2], %s176
          %s178 = smul.u32 8, %s17
          %s180 = ssub.s32 1024, 1024
          %181 = vsyncadd %s174, %s180
          %s182 = smul.addr %s178, 128
          %s183 = scalar_lea.hbm %s0, %s182
          %s184 = sshll.u32 %s177, 4
          %s185 = int_to_ptr.vmem [resolvable:$true] %s184
          %190 = dma.hbm_to_vmem [thread:$0]  %s183, 1024, %s185, %s174, 128, 128, 8
        $region32: #{tpu_custom_call.1} parent=27 // pred_fallthru
          _
      $region28: #{tpu_custom_call.1} parent=5 // pred_fallthru
        _
      %p191 = scmp.le.s32.totalorder 1, %s17
      %p192 = scmp.lt.s32.totalorder %s17, 3
      %p193 = pnand %p191, %p192
      %p194 = pneg %p193
      // Predicated region
      $region33: #{tpu_custom_call.1} parent=5 // pred_check
        _
      $region34: #{tpu_custom_call.1} parent=5 // pred_check_branch
        %196 = sbr.rel (%p193) target = $region36
      $region35: #{tpu_custom_call.1} parent=5 // pred_region
        %s197 = ssub.s32 %s17, 1
        %s198 = sand.u32 %s30, 1
        %s199 = scalar_lea.sflag [#allocation3], %s198
        %s200 = sand.u32 %s30, 1
        %s201 = smul.addr %s200, 64
        %s202 = scalar_lea.vmem [#allocation2], %s201
        // Predicated region
        $region37: #{tpu_custom_call.1} parent=35 // pred_check
          %p203 = pneg %p43
        $region38: #{tpu_custom_call.1} parent=35 // pred_check_branch
          %205 = sbr.rel (%p203) target = $region40
        $region39: #{tpu_custom_call.1} parent=35 // pred_region
          %206 = dma.done %s199, 1024
        $region40: #{tpu_custom_call.1} parent=35 // pred_fallthru
          _
        // Predicated region
        $region41: #{tpu_custom_call.1} parent=35 // pred_check
          %p207 = pneg %p64
        $region42: #{tpu_custom_call.1} parent=35 // pred_check_branch
          %209 = sbr.rel (%p207) target = $region44
        $region43: #{tpu_custom_call.1} parent=35 // pred_region
          %210 = dma.done [#allocation6], 256
        $region44: #{tpu_custom_call.1} parent=35 // pred_fallthru
          _
        %s211 = sand.u32 %s30, 1
        %s212 = scalar_lea.sflag [#allocation3], %s211
        %s213 = sand.u32 %s30, 1
        %s214 = smul.addr %s213, 64
        %s215 = scalar_lea.vmem [#allocation2], %s214
        %p216 = pneg %p43
        %p217 = pneg %p40
        %p218 = pneg %p64
        %p219 = pneg %p61
        %p220 = pneg %p85
        %p221 = pneg %p82
        %p222 = pneg %p106
        %p223 = pneg %p103
        %p224 = pneg %p132
        %p225 = pneg %p129
        %s226 = sand.u32 %s119, 1
        %s227 = scalar_lea.sflag [#allocation4], %s226
        %s228 = sand.u32 %s119, 1
        %s229 = smul.addr %s228, 8
        %s230 = scalar_lea.vmem [#allocation7], %s229
        %s231 = smul.u32 8, %s22
        %v233 = vld [vmem:[#allocation5] sm:$0xf]
        %v234 = vld [vmem:[#allocation5 + $0x4] sm:$0xf]
        %v235 = vld [vmem:[#allocation5 + $0x8] sm:$0xf]
        %v236 = vld [vmem:[#allocation5 + $0xc] sm:$0xf]
        %v237 = vld [vmem:[%s2] sm:$0x1]
        %v238 = vld [vmem:[%s3] sm:$0x1]
        %s239 = smul.u32 0, 8
        %s240 = scalar_lea.vmem %s202, %s239 [#allocation2]
        %v241 = vld [vmem:[%s240] sm:$0xff]
        %v242 = vld [vmem:[%s240 + $0x8] sm:$0xff]
        %v243 = vld [vmem:[%s240 + $0x10] sm:$0xff]
        %v244 = vld [vmem:[%s240 + $0x18] sm:$0xff]
        %v245 = vld [vmem:[%s240 + $0x20] sm:$0xff]
        %v246 = vld [vmem:[%s240 + $0x28] sm:$0xff]
        %v247 = vld [vmem:[%s240 + $0x30] sm:$0xff]
        %v248 = vld [vmem:[%s240 + $0x38] sm:$0xff]
        %v249 = vpack.c.bf16 %v242, %v241
        %v250 = vpack.c.bf16 %v244, %v243
        %v251 = vpack.c.bf16 %v246, %v245
        %v252 = vpack.c.bf16 %v248, %v247
        %v254 = vlaneseq
        %v255 = vshrl.u32 %v254, 7
        %v256 = vsub.s32 0, %v255
        %v257 = vrot.slane %v237, %v256
        %v263 = vunpack.c.l.b16 %v233
        %v264 = vunpack.c.l.b16 %v234
        %v265 = vunpack.c.l.b16 %v235
        %v266 = vunpack.c.l.b16 %v236
        %v267 = vpack.c.b16 %v264, %v263
        %v268 = vpack.c.b16 %v266, %v265
        %vm271 = vcmask 261120
        %v273 = vsel %vm271, %v249, 0
        %v276 = vsel %vm271, %v250, 0
        %v279 = vsel %vm271, %v251, 0
        %v282 = vsel %vm271, %v252, 0
        %284 = vmatprep.subr.bf16.mxu0 0
        %285 = vmatpush1.bf16.msra.mxu0 %v267
        %286 = vmatprep.subr.bf16.mxu0 0
        %287 = vmatpush1.bf16.msra.mxu0 %v268
        %288 = vmatprep.subr.bf16.mxu0 0
        %289 = vmatpush1.bf16.msra.mxu0 0
        %290 = vmatprep.subr.bf16.mxu0 0
        %291 = vmatpush1.bf16.msra.mxu0 0
        %292 = vmatprep.subr.bf16.mxu0 0
        %293 = vmatpush1.bf16.msra.mxu0 0
        %294 = vmatprep.subr.bf16.mxu0 0
        %295 = vmatpush1.bf16.msra.mxu0 0
        %296 = vmatprep.subr.bf16.mxu0 0
        %297 = vmatpush1.bf16.msra.mxu0 0
        %298 = vmatprep.subr.bf16.mxu0 0
        %299 = vmatpush1.bf16.msra.mxu0 0
        %300 = vmatprep.subr.bf16.mxu0 0
        %301 = vmatpush1.bf16.msra.mxu0 0
        %302 = vmatprep.subr.bf16.mxu0 0
        %303 = vmatpush1.bf16.msra.mxu0 0
        %304 = vmatprep.subr.bf16.mxu0 0
        %305 = vmatpush1.bf16.msra.mxu0 0
        %306 = vmatprep.subr.bf16.mxu0 0
        %307 = vmatpush1.bf16.msra.mxu0 0
        %308 = vmatprep.subr.bf16.mxu0 0
        %309 = vmatpush1.bf16.msra.mxu0 0
        %310 = vmatprep.subr.bf16.mxu0 0
        %311 = vmatpush1.bf16.msra.mxu0 0
        %312 = vmatprep.subr.bf16.mxu0 0
        %313 = vmatpush1.bf16.msra.mxu0 0
        %314 = vmatprep.subr.bf16.mxu0 0
        %315 = vmatpush1.bf16.msra.mxu0 0
        %316 = vmatprep.mubr.bf16.mxu0 0
        %317 = vmatmul.mubr.bf16.gmra.mrb[0].mxu0 %v273
        %v318 = vpop.f32.mrb[0].mxu0
        %v319 = vadd.f32 %v257, %v318
        %v320 = vpop.f32.mrb[0].mxu0
        %v321 = vpop.f32.mrb[0].mxu0
        %v322 = vadd.f32 %v257, %v321
        %v323 = vpop.f32.mrb[0].mxu0
        %324 = vmatprep.mubr.bf16.mxu0 0
        %325 = vmatmul.mubr.bf16.gmra.mrb[0].mxu0 %v276
        %v326 = vpop.f32.mrb[0].mxu0
        %v327 = vadd.f32 %v257, %v326
        %v328 = vpop.f32.mrb[0].mxu0
        %v329 = vpop.f32.mrb[0].mxu0
        %v330 = vadd.f32 %v257, %v329
        %v331 = vpop.f32.mrb[0].mxu0
        %332 = vmatprep.mubr.bf16.mxu0 0
        %333 = vmatmul.mubr.bf16.gmra.mrb[0].mxu0 %v279
        %v334 = vpop.f32.mrb[0].mxu0
        %v335 = vadd.f32 %v257, %v334
        %v336 = vpop.f32.mrb[0].mxu0
        %v337 = vpop.f32.mrb[0].mxu0
        %v338 = vadd.f32 %v257, %v337
        %v339 = vpop.f32.mrb[0].mxu0
        %340 = vmatprep.mubr.bf16.mxu0 0
        %341 = vmatmul.mubr.bf16.gmra.mrb[0].mxu0 %v282
        %v342 = vpop.f32.mrb[0].mxu0
        %v343 = vadd.f32 %v257, %v342
        %v344 = vpop.f32.mrb[0].mxu0
        %v345 = vpop.f32.mrb[0].mxu0
        %v346 = vadd.f32 %v257, %v345
        %v347 = vpop.f32.mrb[0].mxu0
        %348 = vdwg.mxu0
        %v349 = vtanh.pop %v319
        %v350 = vtanh.pop %v322
        %v351 = vtanh.pop %v327
        %v352 = vtanh.pop %v330
        %v353 = vtanh.pop %v335
        %v354 = vtanh.pop %v338
        %v355 = vtanh.pop %v343
        %v356 = vtanh.pop %v346
        %v358 = vlaneseq
        %v359 = vshrl.u32 %v358, 7
        %v360 = vsub.s32 0, %v359
        %v361 = vrot.slane %v238, %v360
        %v363 = vmul.f32 %v349, %v361
        %v364 = vmul.f32 %v350, %v361
        %v365 = vmul.f32 %v351, %v361
        %v366 = vmul.f32 %v352, %v361
        %v367 = vmul.f32 %v353, %v361
        %v368 = vmul.f32 %v354, %v361
        %v369 = vmul.f32 %v355, %v361
        %v370 = vmul.f32 %v356, %v361
        %371 = vadd.xlane.f32.xlu0 %v363
        %v372 = vpop.xlane.xlu0 %371
        %373 = vadd.xlane.f32.xlu0 %v364
        %v374 = vpop.xlane.xlu0 %373
        %375 = vadd.xlane.f32.xlu0 %v365
        %v376 = vpop.xlane.xlu0 %375
        %377 = vadd.xlane.f32.xlu0 %v366
        %v378 = vpop.xlane.xlu0 %377
        %379 = vadd.xlane.f32.xlu0 %v367
        %v380 = vpop.xlane.xlu0 %379
        %381 = vadd.xlane.f32.xlu0 %v368
        %v382 = vpop.xlane.xlu0 %381
        %383 = vadd.xlane.f32.xlu0 %v369
        %v384 = vpop.xlane.xlu0 %383
        %385 = vadd.xlane.f32.xlu0 %v370
        %v386 = vpop.xlane.xlu0 %385
        %v395 = vlaneseq
        %v396 = vand.u32 %v395, 127
        %v397 = vlaneseq
        %v398 = vshrl.u32 %v397, 7
        %v399 = vsub.s32 %v396, %v398
        %v400 = vrot.slane %v372, %v399
        %v401 = vlaneseq
        %v402 = vshrl.u32 %v401, 7
        %v403 = vsub.s32 %v396, %v402
        %v404 = vrot.slane %v374, %v403
        %v405 = vlaneseq
        %v406 = vshrl.u32 %v405, 7
        %v407 = vsub.s32 %v396, %v406
        %v408 = vrot.slane %v376, %v407
        %v409 = vlaneseq
        %v410 = vshrl.u32 %v409, 7
        %v411 = vsub.s32 %v396, %v410
        %v412 = vrot.slane %v378, %v411
        %v413 = vlaneseq
        %v414 = vshrl.u32 %v413, 7
        %v415 = vsub.s32 %v396, %v414
        %v416 = vrot.slane %v380, %v415
        %v417 = vlaneseq
        %v418 = vshrl.u32 %v417, 7
        %v419 = vsub.s32 %v396, %v418
        %v420 = vrot.slane %v382, %v419
        %v421 = vlaneseq
        %v422 = vshrl.u32 %v421, 7
        %v423 = vsub.s32 %v396, %v422
        %v424 = vrot.slane %v384, %v423
        %v425 = vlaneseq
        %v426 = vshrl.u32 %v425, 7
        %v427 = vsub.s32 %v396, %v426
        %v428 = vrot.slane %v386, %v427
        %vm429 = vcmask 1041409
        %v430 = vsel %vm429, %v404, %v400
        %vm431 = vcmask 1042434
        %v432 = vsel %vm431, %v408, %v430
        %vm433 = vcmask 1043459
        %v434 = vsel %vm433, %v412, %v432
        %vm435 = vcmask 1044484
        %v436 = vsel %vm435, %v416, %v434
        %vm437 = vcmask 1045509
        %v438 = vsel %vm437, %v420, %v436
        %vm439 = vcmask 1046534
        %v440 = vsel %vm439, %v424, %v438
        %vm441 = vcmask 1047559
        %v442 = vsel %vm441, %v428, %v440
        %vm444 = vcmask 64512
        %v445 = vsel %vm444, %v442, -inf
        %446 = vmax.xlane.f32.xlu0 %v445
        %v447 = vpop.xlane.xlu0 %446
        %v449 = vlaneseq
        %v450 = vshrl.u32 %v449, 7
        %v451 = vsub.s32 0, %v450
        %v452 = vrot.slane %v447, %v451
        %v453 = vlaneseq
        %v454 = vshrl.u32 %v453, 7
        %v455 = vsub.s32 1, %v454
        %v456 = vrot.slane %v447, %v455
        %v457 = vlaneseq
        %v458 = vshrl.u32 %v457, 7
        %v459 = vsub.s32 2, %v458
        %v460 = vrot.slane %v447, %v459
        %v461 = vlaneseq
        %v462 = vshrl.u32 %v461, 7
        %v463 = vsub.s32 3, %v462
        %v464 = vrot.slane %v447, %v463
        %v465 = vlaneseq
        %v466 = vshrl.u32 %v465, 7
        %v467 = vsub.s32 4, %v466
        %v468 = vrot.slane %v447, %v467
        %v469 = vlaneseq
        %v470 = vshrl.u32 %v469, 7
        %v471 = vsub.s32 5, %v470
        %v472 = vrot.slane %v447, %v471
        %v473 = vlaneseq
        %v474 = vshrl.u32 %v473, 7
        %v475 = vsub.s32 6, %v474
        %v476 = vrot.slane %v447, %v475
        %v477 = vlaneseq
        %v478 = vshrl.u32 %v477, 7
        %v479 = vsub.s32 7, %v478
        %v480 = vrot.slane %v447, %v479
        %v489 = vsub.f32 %v372, %v452
        %v490 = vsub.f32 %v374, %v456
        %v491 = vsub.f32 %v376, %v460
        %v492 = vsub.f32 %v378, %v464
        %v493 = vsub.f32 %v380, %v468
        %v494 = vsub.f32 %v382, %v472
        %v495 = vsub.f32 %v384, %v476
        %v496 = vsub.f32 %v386, %v480
        %v497 = vmul.f32 %v489, 1.442695
        %v498 = vpow.pop %v497
        %v499 = vmul.f32 %v490, 1.442695
        %v500 = vpow.pop %v499
        %v501 = vmul.f32 %v491, 1.442695
        %v502 = vpow.pop %v501
        %v503 = vmul.f32 %v492, 1.442695
        %v504 = vpow.pop %v503
        %v505 = vmul.f32 %v493, 1.442695
        %v506 = vpow.pop %v505
        %v507 = vmul.f32 %v494, 1.442695
        %v508 = vpow.pop %v507
        %v509 = vmul.f32 %v495, 1.442695
        %v510 = vpow.pop %v509
        %v511 = vmul.f32 %v496, 1.442695
        %v512 = vpow.pop %v511
        %521 = vset.pattern.permute.xlu0 0
        %522 = vperm.xlu0 %521, %v498
        %v523 = vpop.permute.xlu0 %522
        %524 = vset.pattern.permute.xlu0 0
        %525 = vperm.xlu0 %524, %v500
        %v526 = vpop.permute.xlu0 %525
        %527 = vset.pattern.permute.xlu0 0
        %528 = vperm.xlu0 %527, %v502
        %v529 = vpop.permute.xlu0 %528
        %530 = vset.pattern.permute.xlu0 0
        %531 = vperm.xlu0 %530, %v504
        %v532 = vpop.permute.xlu0 %531
        %533 = vset.pattern.permute.xlu0 0
        %534 = vperm.xlu0 %533, %v506
        %v535 = vpop.permute.xlu0 %534
        %536 = vset.pattern.permute.xlu0 0
        %537 = vperm.xlu0 %536, %v508
        %v538 = vpop.permute.xlu0 %537
        %539 = vset.pattern.permute.xlu0 0
        %540 = vperm.xlu0 %539, %v510
        %v541 = vpop.permute.xlu0 %540
        %542 = vset.pattern.permute.xlu0 0
        %543 = vperm.xlu0 %542, %v512
        %v544 = vpop.permute.xlu0 %543
        %v545 = vlaneseq
        %v546 = vshrl.u32 %v545, 7
        %v547 = vsub.s32 %v396, %v546
        %v548 = vrot.slane %v523, %v547
        %v549 = vlaneseq
        %v550 = vshrl.u32 %v549, 7
        %v551 = vsub.s32 %v396, %v550
        %v552 = vrot.slane %v526, %v551
        %v553 = vlaneseq
        %v554 = vshrl.u32 %v553, 7
        %v555 = vsub.s32 %v396, %v554
        %v556 = vrot.slane %v529, %v555
        %v557 = vlaneseq
        %v558 = vshrl.u32 %v557, 7
        %v559 = vsub.s32 %v396, %v558
        %v560 = vrot.slane %v532, %v559
        %v561 = vlaneseq
        %v562 = vshrl.u32 %v561, 7
        %v563 = vsub.s32 %v396, %v562
        %v564 = vrot.slane %v535, %v563
        %v565 = vlaneseq
        %v566 = vshrl.u32 %v565, 7
        %v567 = vsub.s32 %v396, %v566
        %v568 = vrot.slane %v538, %v567
        %v569 = vlaneseq
        %v570 = vshrl.u32 %v569, 7
        %v571 = vsub.s32 %v396, %v570
        %v572 = vrot.slane %v541, %v571
        %v573 = vlaneseq
        %v574 = vshrl.u32 %v573, 7
        %v575 = vsub.s32 %v396, %v574
        %v576 = vrot.slane %v544, %v575
        %v577 = vsel %vm429, %v552, %v548
        %v578 = vsel %vm431, %v556, %v577
        %v579 = vsel %vm433, %v560, %v578
        %v580 = vsel %vm435, %v564, %v579
        %v581 = vsel %vm437, %v568, %v580
        %v582 = vsel %vm439, %v572, %v581
        %v583 = vsel %vm441, %v576, %v582
        %v585 = vsel %vm444, %v583, 0.0
        %586 = vadd.xlane.f32.xlu0 %v585
        %v587 = vpop.xlane.xlu0 %586
        %v596 = vmul.f32 %v241, %v523
        %v597 = vmul.f32 %v242, %v526
        %v598 = vmul.f32 %v243, %v529
        %v599 = vmul.f32 %v244, %v532
        %v600 = vmul.f32 %v245, %v535
        %v601 = vmul.f32 %v246, %v538
        %v602 = vmul.f32 %v247, %v541
        %v603 = vmul.f32 %v248, %v544
        %v604 = vsel %vm271, %v596, 0.0
        %v605 = vrot.slane %v604, 4
        %v606 = vadd.f32 %v604, %v605
        %v607 = vrot.slane %v606, 2
        %v608 = vadd.f32 %v606, %v607
        %v609 = vrot.slane %v608, 1
        %v610 = vadd.f32 %v608, %v609
        %v611 = vsel %vm271, %v597, 0.0
        %v612 = vrot.slane %v611, 4
        %v613 = vadd.f32 %v611, %v612
        %v614 = vrot.slane %v613, 2
        %v615 = vadd.f32 %v613, %v614
        %v616 = vrot.slane %v615, 1
        %v617 = vadd.f32 %v615, %v616
        %v618 = vsel %vm271, %v598, 0.0
        %v619 = vrot.slane %v618, 4
        %v620 = vadd.f32 %v618, %v619
        %v621 = vrot.slane %v620, 2
        %v622 = vadd.f32 %v620, %v621
        %v623 = vrot.slane %v622, 1
        %v624 = vadd.f32 %v622, %v623
        %v625 = vsel %vm271, %v599, 0.0
        %v626 = vrot.slane %v625, 4
        %v627 = vadd.f32 %v625, %v626
        %v628 = vrot.slane %v627, 2
        %v629 = vadd.f32 %v627, %v628
        %v630 = vrot.slane %v629, 1
        %v631 = vadd.f32 %v629, %v630
        %v632 = vsel %vm271, %v600, 0.0
        %v633 = vrot.slane %v632, 4
        %v634 = vadd.f32 %v632, %v633
        %v635 = vrot.slane %v634, 2
        %v636 = vadd.f32 %v634, %v635
        %v637 = vrot.slane %v636, 1
        %v638 = vadd.f32 %v636, %v637
        %v639 = vsel %vm271, %v601, 0.0
        %v640 = vrot.slane %v639, 4
        %v641 = vadd.f32 %v639, %v640
        %v642 = vrot.slane %v641, 2
        %v643 = vadd.f32 %v641, %v642
        %v644 = vrot.slane %v643, 1
        %v645 = vadd.f32 %v643, %v644
        %v646 = vsel %vm271, %v602, 0.0
        %v647 = vrot.slane %v646, 4
        %v648 = vadd.f32 %v646, %v647
        %v649 = vrot.slane %v648, 2
        %v650 = vadd.f32 %v648, %v649
        %v651 = vrot.slane %v650, 1
        %v652 = vadd.f32 %v650, %v651
        %v653 = vsel %vm271, %v603, 0.0
        %v654 = vrot.slane %v653, 4
        %v655 = vadd.f32 %v653, %v654
        %v656 = vrot.slane %v655, 2
        %v657 = vadd.f32 %v655, %v656
        %v658 = vrot.slane %v657, 1
        %v659 = vadd.f32 %v657, %v658
        %v660 = vrcp.pop %v587
        %v662 = vrot.slane %v660, 1
        %v663 = vrot.slane %v660, 2
        %v664 = vrot.slane %v660, 3
        %v665 = vrot.slane %v660, 4
        %v666 = vrot.slane %v660, 5
        %v667 = vrot.slane %v660, 6
        %v668 = vrot.slane %v660, 7
        %v677 = vmul.f32 %v610, %v660
        %v678 = vmul.f32 %v617, %v662
        %v679 = vmul.f32 %v624, %v663
        %v680 = vmul.f32 %v631, %v664
        %v681 = vmul.f32 %v638, %v665
        %v682 = vmul.f32 %v645, %v666
        %v683 = vmul.f32 %v652, %v667
        %v684 = vmul.f32 %v659, %v668
        %v693 = vrot.slane %v678, 7
        %v694 = vsel %vm429, %v693, %v677
        %v695 = vrot.slane %v679, 6
        %v696 = vsel %vm431, %v695, %v694
        %v697 = vrot.slane %v680, 5
        %v698 = vsel %vm433, %v697, %v696
        %v699 = vrot.slane %v681, 4
        %v700 = vsel %vm435, %v699, %v698
        %v701 = vrot.slane %v682, 3
        %v702 = vsel %vm437, %v701, %v700
        %v703 = vrot.slane %v683, 2
        %v704 = vsel %vm439, %v703, %v702
        %v705 = vrot.slane %v684, 1
        %v706 = vsel %vm441, %v705, %v704
        %708 = vst.msk [vmem:[%s230] sm:$0xff] %vm271, %v706
        %s709 = sand.u32 %s119, 1
        %s710 = scalar_lea.sflag [#allocation4], %s709
        %s711 = sand.u32 %s119, 1
        %s712 = smul.addr %s711, 8
        %s713 = scalar_lea.vmem [#allocation7], %s712
        // Predicated region
        $region45: #{tpu_custom_call.1} parent=35 // pred_check
          %p714 = pneg %p129
        $region46: #{tpu_custom_call.1} parent=35 // pred_check_branch
          %716 = sbr.rel (%p714) target = $region48
        $region47: #{tpu_custom_call.1} parent=35 // pred_region
          %s718 = ssub.s32 128, 128
          %719 = vsyncadd %s710, %s718
          %s720 = smul.addr %s22, 128
          %s721 = scalar_lea.hbm %s4, %s720
          %s723 = sshll.u32 %s713, 4
          %s724 = int_to_ptr.vmem [resolvable:$true] %s723
          %726 = dma.vmem_to_hbm [thread:$0]  %s724, 128, %s721, %s710
        $region48: #{tpu_custom_call.1} parent=35 // pred_fallthru
          _
      $region36: #{tpu_custom_call.1} parent=5 // pred_fallthru
        _
      %p727 = scmp.le.s32.totalorder 2, %s17
      // Predicated region
      $region49: #{tpu_custom_call.1} parent=5 // pred_check
        %p728 = pneg %p727
      $region50: #{tpu_custom_call.1} parent=5 // pred_check_branch
        %730 = sbr.rel (%p728) target = $region52
      $region51: #{tpu_custom_call.1} parent=5 // pred_region
        %s731 = ssub.s32 %s17, 2
        // Predicated region
        $region53: #{tpu_custom_call.1} parent=51 // pred_check
          %p732 = pneg %p135
        $region54: #{tpu_custom_call.1} parent=51 // pred_check_branch
          %734 = sbr.rel (%p732) target = $region56
        $region55: #{tpu_custom_call.1} parent=51 // pred_region
          %s735 = sand.u32 %s120, 1
          %s736 = scalar_lea.sflag [#allocation4], %s735
          %s737 = sand.u32 %s120, 1
          %s738 = smul.addr %s737, 8
          %s739 = scalar_lea.vmem [#allocation7], %s738
          %740 = dma.done %s736, 128
        $region56: #{tpu_custom_call.1} parent=51 // pred_fallthru
          _
      $region52: #{tpu_custom_call.1} parent=5 // pred_fallthru
        _
    $region6: #{tpu_custom_call.1} parent=1 // loop_footer
      %s21 = sadd.s32 1, %s17
    $region7: #{tpu_custom_call.1} parent=1 // loop_footer_branch
      %16 = sbr.rel target = $region3
    $region8: #{tpu_custom_call.1} parent=1 // loop_exit
      _
    %741 = vsyncpa [#allocation3], 1
    %s742 = scalar_lea.sflag [#allocation3], 1
    %743 = vsyncpa %s742, 1
    %744 = vsyncpa [#allocation6], 1
    %745 = vsyncpa [#allocation4], 1
    %s746 = scalar_lea.sflag [#allocation4], 1
    %747 = vsyncpa %s746, 1

</llo_original>
